<compile_context>
chip_gen: v5e
topology: v5e:2x2
jax: 0.10.0
libtpu: 0.0.40
codegen_flags: <defaults>
</compile_context>

<pallas_src>
import jax
import jax.numpy as jnp
from jax.experimental import pallas as pl
from jax.experimental.pallas import tpu as pltpu


def _round_up(x, m):
    return (x + m - 1) // m * m


def _critic_kernel(xs_ref, xa_ref, w1s_ref, w1a_ref, b1_ref, w2_ref, b2_ref,
                   w3_ref, b3_ref, out_ref):
    """Fused 3-layer MLP over one batch tile.

    h1 = relu(xs @ W1_s + xa @ W1_a + b1)   # fc1 split over state/action rows
    h2 = relu(h1 @ W2 + b2)
    q  = sum(h2 * w3_row, -1) + b3          # fc3 on VPU/XLU, not MXU (N=1)
    """
    h1 = (jnp.dot(xs_ref[...], w1s_ref[...], preferred_element_type=jnp.float32)
          + jnp.dot(xa_ref[...], w1a_ref[...], preferred_element_type=jnp.float32)
          + b1_ref[...])
    h1 = jnp.maximum(h1, 0.0)

    h2 = jnp.dot(h1.astype(w2_ref.dtype), w2_ref[...],
                 preferred_element_type=jnp.float32) + b2_ref[...]
    h2 = jnp.maximum(h2, 0.0)

    q = jnp.sum(h2 * w3_ref[...], axis=-1, keepdims=True) + b3_ref[0]
    out_ref[...] = q.astype(out_ref.dtype)


def critic_forward(state_full, actions, params, *, tile_b=512, use_bf16=True):
    """state_full: (B, numAgents, S), actions: (B, numAgents, A) -> (B, 1)."""
    B, nA, S = state_full.shape
    A = actions.shape[2]
    w1, b1, w2, b2, w3, b3 = params
    H = w1.shape[1]

    # Split / permute W1 rows so the kernel consumes the un-concatenated
    # state & action tensors directly (saves an HBM round-trip of the
    # concatenated activation).  Row order of w1 is [agent, (S then A), :].
    w1_view = w1.reshape(nA, S + A, H)
    w1_s = w1_view[:, :S, :].reshape(nA * S, H)
    w1_a = w1_view[:, S:, :].reshape(nA * A, H)

    xs = state_full.reshape(B, nA * S)
    xa = actions.reshape(B, nA * A)

    mxu_dtype = jnp.bfloat16 if use_bf16 else jnp.float32
    xs = xs.astype(mxu_dtype)
    xa = xa.astype(mxu_dtype)
    w1_s = w1_s.astype(mxu_dtype)
    w1_a = w1_a.astype(mxu_dtype)
    w2_k = w2.astype(mxu_dtype)
    b1_k = b1.astype(jnp.float32)
    b2_k = b2.astype(jnp.float32)
    w3_row = w3.reshape(1, H).astype(jnp.float32)   # (1, 64) row for VPU mul
    b3_s = b3.reshape(1).astype(jnp.float32)        # scalar, lives in SMEM

    # Batch tiling: TILE_B rows per grid step (multiple of 8), pad tail tile.
    tile_b = _round_up(max(8, min(tile_b, B)), 8)
    b_pad = _round_up(B, tile_b)
    if b_pad != B:
        pad = ((0, b_pad - B), (0, 0))
        xs = jnp.pad(xs, pad)
        xa = jnp.pad(xa, pad)
    grid = (b_pad // tile_b,)

    ds = nA * S
    da = nA * A

    out = pl.pallas_call(
        _critic_kernel,
        out_shape=jax.ShapeDtypeStruct((b_pad, 1), jnp.float32),
        grid=grid,
        in_specs=[
            pl.BlockSpec((tile_b, ds), lambda i: (i, 0)),      # xs tile (pipelined)
            pl.BlockSpec((tile_b, da), lambda i: (i, 0)),      # xa tile (pipelined)
            pl.BlockSpec((ds, H), lambda i: (0, 0)),           # W1 state rows (resident)
            pl.BlockSpec((da, H), lambda i: (0, 0)),           # W1 action rows (resident)
            pl.BlockSpec((1, H), lambda i: (0, 0)),            # b1
            pl.BlockSpec((H, H), lambda i: (0, 0)),            # W2
            pl.BlockSpec((1, H), lambda i: (0, 0)),            # b2
            pl.BlockSpec((1, H), lambda i: (0, 0)),            # w3 as a row
            pl.BlockSpec(memory_space=pltpu.MemorySpace.SMEM), # b3 scalar
        ],
        out_specs=pl.BlockSpec((tile_b, 1), lambda i: (i, 0)),
        compiler_params=pltpu.CompilerParams(
            dimension_semantics=("parallel",)),
    )(xs, xa, w1_s, w1_a, b1_k, w2_k, b2_k, w3_row, b3_s)
    return out[:B]


def init_critic_params(key, state_size, action_size, num_agents):
    """Kaiming-uniform-style init matching the module's shapes.

    fc1: (numAgents*(S+A)) -> 64, fc2: 64 -> 64, fc3: 64 -> 1.
    Weights stored transposed as (in, out) for the x @ W kernel convention.
    """
    d_in = num_agents * (state_size + action_size)

    def kaiming_uniform(k, fan_in, fan_out):
        bound = jnp.sqrt(6.0 / fan_in)
        return jax.random.uniform(k, (fan_in, fan_out), jnp.float32, -bound, bound)

    def bias_init(k, fan_in, fan_out):
        bound = 1.0 / jnp.sqrt(jnp.float32(fan_in))
        return jax.random.uniform(k, (1, fan_out), jnp.float32, -bound, bound)

    ks = jax.random.split(key, 6)
    w1 = kaiming_uniform(ks[0], d_in, 64)
    b1 = bias_init(ks[1], d_in, 64)
    w2 = kaiming_uniform(ks[2], 64, 64)
    b2 = bias_init(ks[3], 64, 64)
    w3 = kaiming_uniform(ks[4], 64, 1)
    b3 = bias_init(ks[5], 64, 1)
    return (w1, b1, w2, b2, w3, b3)


def _reference_forward(state_full, actions, params):
    """Pure-JAX f32 reference (matches the PyTorch forward)."""
    B = state_full.shape[0]
    sa = jnp.concatenate([state_full, actions], axis=2).reshape(B, -1)
    w1, b1, w2, b2, w3, b3 = params
    h1 = jax.nn.relu(sa @ w1 + b1)
    h2 = jax.nn.relu(h1 @ w2 + b2)
    return h2 @ w3 + b3


if __name__ == "__main__":
    B, NUM_AGENTS, STATE_SIZE, ACTION_SIZE = 8, 2, 12, 4

    key = jax.random.PRNGKey(0)
    k_params, k_state, k_action = jax.random.split(key, 3)

    params = init_critic_params(k_params, STATE_SIZE, ACTION_SIZE, NUM_AGENTS)
    state_full = jax.random.normal(k_state, (B, NUM_AGENTS, STATE_SIZE), jnp.float32)
    actions = jax.random.normal(k_action, (B, NUM_AGENTS, ACTION_SIZE), jnp.float32)

    ref = _reference_forward(state_full, actions, params)

    # 1) f32 path: exact structural check (split-W1, VPU fc3, grid of 1).
    out_f32 = jax.block_until_ready(
        critic_forward(state_full, actions, params, use_bf16=False))
    assert out_f32.shape == (B, 1), out_f32.shape
    assert jnp.allclose(out_f32, ref, atol=1e-5, rtol=1e-5), "f32 mismatch vs reference"

    # 2) bf16 path with multi-step grid + tail padding (B=20, tile_b=8 -> 3 tiles).
    B2 = 20
    k_s2, k_a2 = jax.random.split(jax.random.PRNGKey(1), 2)
    sf2 = jax.random.normal(k_s2, (B2, NUM_AGENTS, STATE_SIZE), jnp.float32)
    ac2 = jax.random.normal(k_a2, (B2, NUM_AGENTS, ACTION_SIZE), jnp.float32)
    out_bf16 = jax.block_until_ready(
        critic_forward(sf2, ac2, params, tile_b=8, use_bf16=True))
    ref2 = _reference_forward(sf2, ac2, params)
    assert out_bf16.shape == (B2, 1), out_bf16.shape
    # bf16 inputs -> loosened tolerance (f32 accumulation, shallow reductions).
    assert jnp.allclose(out_bf16, ref2, atol=1e-1, rtol=1e-1), "bf16 mismatch vs reference"

    print("KERNEL_OK")
</pallas_src>

<mosaic_0001>
module attributes {stable_mosaic.version = 11 : i64} {
  func.func @_critic_kernel(%arg0: i32, %arg1: memref<8x24xf32, #tpu.memory_space<vmem>>, %arg2: memref<8x8xf32, #tpu.memory_space<vmem>>, %arg3: memref<24x64xf32, #tpu.memory_space<vmem>>, %arg4: memref<8x64xf32, #tpu.memory_space<vmem>>, %arg5: memref<1x64xf32, #tpu.memory_space<vmem>>, %arg6: memref<64x64xf32, #tpu.memory_space<vmem>>, %arg7: memref<1x64xf32, #tpu.memory_space<vmem>>, %arg8: memref<1x64xf32, #tpu.memory_space<vmem>>, %arg9: memref<1xf32, #tpu.memory_space<smem>>, %arg10: memref<8x1xf32, #tpu.memory_space<vmem>>) attributes {dimension_semantics = [#tpu.dimension_semantics<parallel>], iteration_bounds = array<i64: 1>, scalar_prefetch = 0 : i64, scratch_operands = 0 : i64, tpu.core_type = #tpu.core_type<tc>, window_params = [{transform_indices = @transform_0, window_bounds = array<i64: 8, 24>}, {transform_indices = @transform_1, window_bounds = array<i64: 8, 8>}, {pipeline_mode = #tpu.pipeline_mode<synchronous>, transform_indices = @transform_2, window_bounds = array<i64: 24, 64>}, {pipeline_mode = #tpu.pipeline_mode<synchronous>, transform_indices = @transform_3, window_bounds = array<i64: 8, 64>}, {pipeline_mode = #tpu.pipeline_mode<synchronous>, transform_indices = @transform_4, window_bounds = array<i64: 1, 64>}, {pipeline_mode = #tpu.pipeline_mode<synchronous>, transform_indices = @transform_5, window_bounds = array<i64: 64, 64>}, {pipeline_mode = #tpu.pipeline_mode<synchronous>, transform_indices = @transform_6, window_bounds = array<i64: 1, 64>}, {pipeline_mode = #tpu.pipeline_mode<synchronous>, transform_indices = @transform_7, window_bounds = array<i64: 1, 64>}, {transform_indices = @transform_8, window_bounds = array<i64: 1>}, {transform_indices = @transform_9, window_bounds = array<i64: 8, 1>}]} {
    %c0 = arith.constant 0 : index
    %c0_0 = arith.constant 0 : index
    %0 = vector.load %arg1[%c0, %c0_0] : memref<8x24xf32, #tpu.memory_space<vmem>>, vector<8x24xf32>
    %c0_1 = arith.constant 0 : index
    %c0_2 = arith.constant 0 : index
    %1 = vector.load %arg3[%c0_1, %c0_2] : memref<24x64xf32, #tpu.memory_space<vmem>>, vector<24x64xf32>
    %cst = arith.constant dense<0.000000e+00> : vector<8x64xf32>
    %2 = tpu.matmul %0, %1, %cst {dimension_numbers = #tpu.dot_dimension_numbers<[1], [0], [0], [1], [0, 0, 1, 1], [], []>} : vector<8x24xf32>, vector<24x64xf32>, vector<8x64xf32> -> vector<8x64xf32>
    %c0_3 = arith.constant 0 : index
    %c0_4 = arith.constant 0 : index
    %3 = vector.load %arg2[%c0_3, %c0_4] : memref<8x8xf32, #tpu.memory_space<vmem>>, vector<8x8xf32>
    %c0_5 = arith.constant 0 : index
    %c0_6 = arith.constant 0 : index
    %4 = vector.load %arg4[%c0_5, %c0_6] : memref<8x64xf32, #tpu.memory_space<vmem>>, vector<8x64xf32>
    %cst_7 = arith.constant dense<0.000000e+00> : vector<8x64xf32>
    %5 = tpu.matmul %3, %4, %cst_7 {dimension_numbers = #tpu.dot_dimension_numbers<[1], [0], [0], [1], [0, 0, 1, 1], [], []>} : vector<8x8xf32>, vector<8x64xf32>, vector<8x64xf32> -> vector<8x64xf32>
    %6 = arith.addf %2, %5 : vector<8x64xf32>
    %c0_8 = arith.constant 0 : index
    %c0_9 = arith.constant 0 : index
    %7 = vector.load %arg5[%c0_8, %c0_9] : memref<1x64xf32, #tpu.memory_space<vmem>>, vector<1x64xf32>
    %8 = vector.broadcast %7 : vector<1x64xf32> to vector<8x64xf32>
    %9 = arith.addf %6, %8 : vector<8x64xf32>
    %cst_10 = arith.constant 0.000000e+00 : f32
    %10 = vector.broadcast %cst_10 : f32 to vector<8x64xf32>
    %11 = arith.maximumf %9, %10 : vector<8x64xf32>
    %c0_11 = arith.constant 0 : index
    %c0_12 = arith.constant 0 : index
    %12 = vector.load %arg6[%c0_11, %c0_12] : memref<64x64xf32, #tpu.memory_space<vmem>>, vector<64x64xf32>
    %cst_13 = arith.constant dense<0.000000e+00> : vector<8x64xf32>
    %13 = tpu.matmul %11, %12, %cst_13 {dimension_numbers = #tpu.dot_dimension_numbers<[1], [0], [0], [1], [0, 0, 1, 1], [], []>} : vector<8x64xf32>, vector<64x64xf32>, vector<8x64xf32> -> vector<8x64xf32>
    %c0_14 = arith.constant 0 : index
    %c0_15 = arith.constant 0 : index
    %14 = vector.load %arg7[%c0_14, %c0_15] : memref<1x64xf32, #tpu.memory_space<vmem>>, vector<1x64xf32>
    %15 = vector.broadcast %14 : vector<1x64xf32> to vector<8x64xf32>
    %16 = arith.addf %13, %15 : vector<8x64xf32>
    %cst_16 = arith.constant 0.000000e+00 : f32
    %17 = vector.broadcast %cst_16 : f32 to vector<8x64xf32>
    %18 = arith.maximumf %16, %17 : vector<8x64xf32>
    %c0_17 = arith.constant 0 : index
    %c0_18 = arith.constant 0 : index
    %19 = vector.load %arg8[%c0_17, %c0_18] : memref<1x64xf32, #tpu.memory_space<vmem>>, vector<1x64xf32>
    %20 = vector.broadcast %19 : vector<1x64xf32> to vector<8x64xf32>
    %21 = arith.mulf %18, %20 : vector<8x64xf32>
    %cst_19 = arith.constant dense<0.000000e+00> : vector<8xf32>
    %22 = vector.multi_reduction <add>, %21, %cst_19 [1] : vector<8x64xf32> to vector<8xf32>
    %23 = vector.shape_cast %22 : vector<8xf32> to vector<8x1xf32>
    %c0_20 = arith.constant 0 : index
    %24 = memref.load %arg9[%c0_20] : memref<1xf32, #tpu.memory_space<smem>>
    %25 = vector.broadcast %24 : f32 to vector<8x1xf32>
    %26 = arith.addf %23, %25 : vector<8x1xf32>
    %c0_21 = arith.constant 0 : index
    %c0_22 = arith.constant 0 : index
    %27 = vector.load %arg10[%c0_21, %c0_22] : memref<8x1xf32, #tpu.memory_space<vmem>>, vector<8x1xf32>
    tpu.vector_store %arg10[%c0_21, %c0_22], %26 {strides = array<i32>} : memref<8x1xf32, #tpu.memory_space<vmem>>, vector<8x1xf32>,
    return
  }
  func.func @transform_0(%arg0: i32) -> (i32, i32) {
    %c0_i32 = arith.constant 0 : i32
    %c0_i32_0 = arith.constant 0 : i32
    return %arg0, %c0_i32 : i32, i32
  }
  func.func @transform_1(%arg0: i32) -> (i32, i32) {
    %c0_i32 = arith.constant 0 : i32
    %c0_i32_0 = arith.constant 0 : i32
    return %arg0, %c0_i32 : i32, i32
  }
  func.func @transform_2(%arg0: i32) -> (i32, i32) {
    %c0_i32 = arith.constant 0 : i32
    %c0_i32_0 = arith.constant 0 : i32
    %c0_i32_1 = arith.constant 0 : i32
    return %c0_i32, %c0_i32_0 : i32, i32
  }
  func.func @transform_3(%arg0: i32) -> (i32, i32) {
    %c0_i32 = arith.constant 0 : i32
    %c0_i32_0 = arith.constant 0 : i32
    %c0_i32_1 = arith.constant 0 : i32
    return %c0_i32, %c0_i32_0 : i32, i32
  }
  func.func @transform_4(%arg0: i32) -> (i32, i32) {
    %c0_i32 = arith.constant 0 : i32
    %c0_i32_0 = arith.constant 0 : i32
    %c0_i32_1 = arith.constant 0 : i32
    return %c0_i32, %c0_i32_0 : i32, i32
  }
  func.func @transform_5(%arg0: i32) -> (i32, i32) {
    %c0_i32 = arith.constant 0 : i32
    %c0_i32_0 = arith.constant 0 : i32
    %c0_i32_1 = arith.constant 0 : i32
    return %c0_i32, %c0_i32_0 : i32, i32
  }
  func.func @transform_6(%arg0: i32) -> (i32, i32) {
    %c0_i32 = arith.constant 0 : i32
    %c0_i32_0 = arith.constant 0 : i32
    %c0_i32_1 = arith.constant 0 : i32
    return %c0_i32, %c0_i32_0 : i32, i32
  }
  func.func @transform_7(%arg0: i32) -> (i32, i32) {
    %c0_i32 = arith.constant 0 : i32
    %c0_i32_0 = arith.constant 0 : i32
    %c0_i32_1 = arith.constant 0 : i32
    return %c0_i32, %c0_i32_0 : i32, i32
  }
  func.func @transform_8(%arg0: i32) -> i32 {
    %c0_i32 = arith.constant 0 : i32
    %c0_i32_0 = arith.constant 0 : i32
    return %c0_i32 : i32
  }
  func.func @transform_9(%arg0: i32) -> (i32, i32) {
    %c0_i32 = arith.constant 0 : i32
    %c0_i32_0 = arith.constant 0 : i32
    return %arg0, %c0_i32 : i32, i32
  }
}

</mosaic_0001>

<llo_original>
// kernel: tpu_custom_call.1
$region0: #{tpu_custom_call.1}
  #allocation0 [shape = 'u32[]', space=smem, size = 0x4, offset = 0x4, fixed_abs, tag = 'smem constant byte address 0x4 - core index']
  #allocation1 [shape = 'u32[72,128]{1,0:T(1,128)}', space=vmem, size = 0x9000, scoped, tag = 'internal scratch']
  #allocation2 [shape = 'f32[1]{0:T(128)S(6)}', space=smem, size = 0x200, scoped, tag = 'scoped memory for tpu_custom_call.1']
  %s0 = inlined_call_operand.hbm [shape: f32[8,24], index: 0, kind: input, shape index: {}]
  %s1 = inlined_call_operand.hbm [shape: f32[8,8], index: 1, kind: input, shape index: {}]
  %s2 = inlined_call_operand.hbm [shape: f32[24,64], index: 2, kind: input, shape index: {}]
  %s3 = inlined_call_operand.hbm [shape: f32[8,64], index: 3, kind: input, shape index: {}]
  %s4 = inlined_call_operand.vmem [shape: f32[1,64], index: 4, kind: input, shape index: {}]
  %s5 = inlined_call_operand.hbm [shape: f32[64,64], index: 5, kind: input, shape index: {}]
  %s6 = inlined_call_operand.vmem [shape: f32[1,64], index: 6, kind: input, shape index: {}]
  %s7 = inlined_call_operand.vmem [shape: f32[1,64], index: 7, kind: input, shape index: {}]
  %s8 = inlined_call_operand.<no memory space> [shape: f32[1], index: 8, kind: input, shape index: {}]
  %s9 = inlined_call_operand.vmem [shape: f32[8,1], index: 9, kind: output, shape index: {}]
  %s10 = sld [smem:[#allocation0]]
  $region66: #{tpu_custom_call.1} parent=0
    _
  %s12 = ssub.s32 1, %s10
  %s13 = scalar_select 0, %s12, %s10
  %14 = sst [smem:[#allocation2]] %s8
  $region1: #{tpu_custom_call.1} parent=0
    #allocation3 [shape = 'u8[4096]{0}', space=vmem, size = 0x1000, scoped, tag = 'input window, operand 0, single buffered']
    #allocation4 [shape = 's32[1]{0}', space=sflag, size = 0x4, scoped, tag = 'scoped memory for tpu_custom_call.1']
    #allocation5 [shape = 'u8[4096]{0}', space=vmem, size = 0x1000, scoped, tag = 'input window, operand 1, single buffered']
    #allocation6 [shape = 's32[1]{0}', space=sflag, size = 0x4, scoped, tag = 'scoped memory for tpu_custom_call.1']
    #allocation7 [shape = 'u8[12288]{0}', space=vmem, size = 0x3000, scoped, tag = 'input window, operand 2, single buffered']
    #allocation8 [shape = 'u8[4096]{0}', space=vmem, size = 0x1000, scoped, tag = 'input window, operand 3, single buffered']
    #allocation9 [shape = 's32[1]{0}', space=sflag, size = 0x4, scoped, tag = 'scoped memory for tpu_custom_call.1']
    #allocation10 [shape = 'u8[32768]{0}', space=vmem, size = 0x8000, scoped, tag = 'input window, operand 5, single buffered']
    %15 = vsyncpa [#allocation4], 0
    %16 = vsyncpa [#allocation6], 0
    %17 = vsyncpa [#allocation9], 0
    // Predicated region
    $region2: #{tpu_custom_call.1} parent=1 // pred_check
      _
    $region3: #{tpu_custom_call.1} parent=1 // pred_check_branch
      %19 = sbr.rel (0) target = $region5
    $region4: #{tpu_custom_call.1} parent=1 // pred_region
      %21 = vsyncadd [#allocation4], 0
      %s23 = sshll.u32 %s0, 4
      %s24 = int_to_ptr.hbm [resolvable:$true] %s23
      %s25 = sshll.u32 [#allocation3], 4
      %s26 = int_to_ptr.vmem [resolvable:$true] %s25
      %28 = dma.hbm_to_vmem [thread:$0]  %s24, 128, %s26, [#allocation4]
    $region5: #{tpu_custom_call.1} parent=1 // pred_fallthru
      _
    // Predicated region
    $region6: #{tpu_custom_call.1} parent=1 // pred_check
      _
    $region7: #{tpu_custom_call.1} parent=1 // pred_check_branch
      %30 = sbr.rel (0) target = $region9
    $region8: #{tpu_custom_call.1} parent=1 // pred_region
      %32 = vsyncadd [#allocation6], 0
      %s34 = sshll.u32 %s1, 4
      %s35 = int_to_ptr.hbm [resolvable:$true] %s34
      %s36 = sshll.u32 [#allocation5], 4
      %s37 = int_to_ptr.vmem [resolvable:$true] %s36
      %39 = dma.hbm_to_vmem [thread:$0]  %s35, 128, %s37, [#allocation6]
    $region9: #{tpu_custom_call.1} parent=1 // pred_fallthru
      _
    // Predicated region
    $region10: #{tpu_custom_call.1} parent=1 // pred_check
      _
    $region11: #{tpu_custom_call.1} parent=1 // pred_check_branch
      %41 = sbr.rel (0) target = $region13
    $region12: #{tpu_custom_call.1} parent=1 // pred_region
      %43 = vsyncadd [#allocation6], 0
      %s44 = sshll.u32 %s2, 4
      %s45 = int_to_ptr.hbm [resolvable:$true] %s44
      %s46 = sshll.u32 [#allocation7], 4
      %s47 = int_to_ptr.vmem [resolvable:$true] %s46
      %52 = dma.hbm_to_vmem [thread:$0]  %s45, 384, %s47, [#allocation6], 128, 128, 8
    $region13: #{tpu_custom_call.1} parent=1 // pred_fallthru
      _
    // Predicated region
    $region14: #{tpu_custom_call.1} parent=1 // pred_check
      _
    $region15: #{tpu_custom_call.1} parent=1 // pred_check_branch
      %54 = sbr.rel (0) target = $region17
    $region16: #{tpu_custom_call.1} parent=1 // pred_region
      %56 = vsyncadd [#allocation9], 0
      %s58 = sshll.u32 %s3, 4
      %s59 = int_to_ptr.hbm [resolvable:$true] %s58
      %s60 = sshll.u32 [#allocation8], 4
      %s61 = int_to_ptr.vmem [resolvable:$true] %s60
      %63 = dma.hbm_to_vmem [thread:$0]  %s59, 128, %s61, [#allocation9]
    $region17: #{tpu_custom_call.1} parent=1 // pred_fallthru
      _
    // Predicated region
    $region18: #{tpu_custom_call.1} parent=1 // pred_check
      _
    $region19: #{tpu_custom_call.1} parent=1 // pred_check_branch
      %65 = sbr.rel (0) target = $region21
    $region20: #{tpu_custom_call.1} parent=1 // pred_region
      _
    $region21: #{tpu_custom_call.1} parent=1 // pred_fallthru
      _
    // Predicated region
    $region22: #{tpu_custom_call.1} parent=1 // pred_check
      _
    $region23: #{tpu_custom_call.1} parent=1 // pred_check_branch
      %67 = sbr.rel (0) target = $region25
    $region24: #{tpu_custom_call.1} parent=1 // pred_region
      %69 = vsyncadd [#allocation9], 0
      %s70 = sshll.u32 %s5, 4
      %s71 = int_to_ptr.hbm [resolvable:$true] %s70
      %s72 = sshll.u32 [#allocation10], 4
      %s73 = int_to_ptr.vmem [resolvable:$true] %s72
      %78 = dma.hbm_to_vmem [thread:$0]  %s71, 1024, %s73, [#allocation9], 128, 128, 8
    $region25: #{tpu_custom_call.1} parent=1 // pred_fallthru
      _
    // Predicated region
    $region26: #{tpu_custom_call.1} parent=1 // pred_check
      _
    $region27: #{tpu_custom_call.1} parent=1 // pred_check_branch
      %80 = sbr.rel (0) target = $region29
    $region28: #{tpu_custom_call.1} parent=1 // pred_region
      _
    $region29: #{tpu_custom_call.1} parent=1 // pred_fallthru
      _
    // Predicated region
    $region30: #{tpu_custom_call.1} parent=1 // pred_check
      _
    $region31: #{tpu_custom_call.1} parent=1 // pred_check_branch
      %82 = sbr.rel (0) target = $region33
    $region32: #{tpu_custom_call.1} parent=1 // pred_region
      _
    $region33: #{tpu_custom_call.1} parent=1 // pred_fallthru
      _
    // Predicated region
    $region34: #{tpu_custom_call.1} parent=1 // pred_check
      _
    $region35: #{tpu_custom_call.1} parent=1 // pred_check_branch
      %84 = sbr.rel (0) target = $region37
    $region36: #{tpu_custom_call.1} parent=1 // pred_region
      _
    $region37: #{tpu_custom_call.1} parent=1 // pred_fallthru
      _
    // Predicated region
    $region38: #{tpu_custom_call.1} parent=1 // pred_check
      _
    $region39: #{tpu_custom_call.1} parent=1 // pred_check_branch
      %86 = sbr.rel (0) target = $region41
    $region40: #{tpu_custom_call.1} parent=1 // pred_region
      %88 = dma.done [#allocation4], 128
    $region41: #{tpu_custom_call.1} parent=1 // pred_fallthru
      _
    // Predicated region
    $region42: #{tpu_custom_call.1} parent=1 // pred_check
      _
    $region43: #{tpu_custom_call.1} parent=1 // pred_check_branch
      %90 = sbr.rel (0) target = $region45
    $region44: #{tpu_custom_call.1} parent=1 // pred_region
      %92 = dma.done [#allocation6], 128
    $region45: #{tpu_custom_call.1} parent=1 // pred_fallthru
      _
    // Predicated region
    $region46: #{tpu_custom_call.1} parent=1 // pred_check
      _
    $region47: #{tpu_custom_call.1} parent=1 // pred_check_branch
      %94 = sbr.rel (0) target = $region49
    $region48: #{tpu_custom_call.1} parent=1 // pred_region
      %96 = dma.done [#allocation6], 384
    $region49: #{tpu_custom_call.1} parent=1 // pred_fallthru
      _
    // Predicated region
    $region50: #{tpu_custom_call.1} parent=1 // pred_check
      _
    $region51: #{tpu_custom_call.1} parent=1 // pred_check_branch
      %98 = sbr.rel (0) target = $region53
    $region52: #{tpu_custom_call.1} parent=1 // pred_region
      %100 = dma.done [#allocation9], 128
    $region53: #{tpu_custom_call.1} parent=1 // pred_fallthru
      _
    // Predicated region
    $region54: #{tpu_custom_call.1} parent=1 // pred_check
      _
    $region55: #{tpu_custom_call.1} parent=1 // pred_check_branch
      %102 = sbr.rel (0) target = $region57
    $region56: #{tpu_custom_call.1} parent=1 // pred_region
      %104 = dma.done [#allocation9], 1024
    $region57: #{tpu_custom_call.1} parent=1 // pred_fallthru
      _
    %v105 = vld [vmem:[#allocation3] sm:$0xff]
    %v106 = vld [vmem:[#allocation7] sm:$0xff]
    %v107 = vld [vmem:[#allocation7 + $0x8] sm:$0xff]
    %v108 = vld [vmem:[#allocation7 + $0x10] sm:$0xff]
    %v109 = vld [vmem:[#allocation5] sm:$0xff]
    %v110 = vld [vmem:[#allocation8] sm:$0xff]
    %vm111 = vcmask 64512
    %v113 = vsel %vm111, %v109, 0
    %115 = vmatpush.msra.mxu0 0.0
    %116 = vmatpush.msra.mxu0 0.0
    %117 = vmatpush.msra.mxu0 0.0
    %118 = vmatpush.msra.mxu0 0.0
    %119 = vmatpush.msra.mxu0 0.0
    %120 = vmatpush.msra.mxu0 0.0
    %121 = vmatpush.msra.mxu0 0.0
    %122 = vmatpush.msra.mxu0 0.0
    %123 = vmatpush.msra.mxu0 0.0
    %124 = vmatpush.msra.mxu0 0.0
    %125 = vmatpush.msra.mxu0 0.0
    %126 = vmatpush.msra.mxu0 0.0
    %127 = vmatpush.msra.mxu0 0.0
    %128 = vmatpush.msra.mxu0 0.0
    %129 = vmatpush.msra.mxu0 0.0
    %130 = vmatpush.msra.mxu0 %v110
    %131 = vmatmul.f32.gmra.mxu0 %v113
    %v132 = vpop.f32.mrf.mxu0
    %v133 = vadd.f32 0.0, %v132
    %134 = vdwg.mxu0
    %vm135 = vcmask 195584
    %v137 = vsel %vm135, %v105, 0
    %139 = vmatpush.msra.mxu0 0.0
    %140 = vmatpush.msra.mxu0 0.0
    %141 = vmatpush.msra.mxu0 0.0
    %142 = vmatpush.msra.mxu0 0.0
    %143 = vmatpush.msra.mxu0 0.0
    %144 = vmatpush.msra.mxu0 0.0
    %145 = vmatpush.msra.mxu0 0.0
    %146 = vmatpush.msra.mxu0 0.0
    %147 = vmatpush.msra.mxu0 0.0
    %148 = vmatpush.msra.mxu0 0.0
    %149 = vmatpush.msra.mxu0 0.0
    %150 = vmatpush.msra.mxu0 0.0
    %151 = vmatpush.msra.mxu0 0.0
    %152 = vmatpush.msra.mxu0 %v108
    %153 = vmatpush.msra.mxu0 %v107
    %154 = vmatpush.msra.mxu0 %v106
    %155 = vmatmul.f32.gmra.mxu0 %v137
    %v156 = vpop.f32.mrf.mxu0
    %v157 = vadd.f32 %v133, %v156
    %158 = vdwg.mxu0
    %v159 = vld [vmem:[%s4] sm:$0x1]
    %v161 = vperm.slane %v159, 0
    %v163 = vadd.f32 %v157, %v161
    %v164 = vmax.f32 %v163, 0.0
    %v165 = vld [vmem:[#allocation10] sm:$0xff]
    %v166 = vld [vmem:[#allocation10 + $0x8] sm:$0xff]
    %v167 = vld [vmem:[#allocation10 + $0x10] sm:$0xff]
    %v168 = vld [vmem:[#allocation10 + $0x18] sm:$0xff]
    %v169 = vld [vmem:[#allocation10 + $0x20] sm:$0xff]
    %v170 = vld [vmem:[#allocation10 + $0x28] sm:$0xff]
    %v171 = vld [vmem:[#allocation10 + $0x30] sm:$0xff]
    %v172 = vld [vmem:[#allocation10 + $0x38] sm:$0xff]
    %v173 = vld [vmem:[%s6] sm:$0x1]
    %v175 = vperm.slane %v173, 0
    %vm177 = vcmask 523264
    %v179 = vsel %vm177, %v164, 0
    %181 = vmatpush.msra.mxu0 0.0
    %182 = vmatpush.msra.mxu0 0.0
    %183 = vmatpush.msra.mxu0 0.0
    %184 = vmatpush.msra.mxu0 0.0
    %185 = vmatpush.msra.mxu0 0.0
    %186 = vmatpush.msra.mxu0 0.0
    %187 = vmatpush.msra.mxu0 0.0
    %188 = vmatpush.msra.mxu0 0.0
    %189 = vmatpush.msra.mxu0 %v172
    %190 = vmatpush.msra.mxu0 %v171
    %191 = vmatpush.msra.mxu0 %v170
    %192 = vmatpush.msra.mxu0 %v169
    %193 = vmatpush.msra.mxu0 %v168
    %194 = vmatpush.msra.mxu0 %v167
    %195 = vmatpush.msra.mxu0 %v166
    %196 = vmatpush.msra.mxu0 %v165
    %197 = vmatmul.f32.gmra.mxu0 %v179
    %v198 = vpop.f32.mrf.mxu0
    %v199 = vadd.f32 %v175, %v198
    %200 = vdwg.mxu0
    %v201 = vmax.f32 %v199, 0.0
    %v202 = vld [vmem:[%s7] sm:$0x1]
    %v204 = vperm.slane %v202, 0
    %v206 = vmul.f32 %v201, %v204
    %v207 = vsel %vm177, %v206, 0.0
    %208 = vadd.xlane.f32.xlu0 %v207
    %v209 = vpop.xlane.xlu0 %208
    %s210 = sld [smem:[#allocation2]]
    %v211 = vstv %s210
    %v212 = vadd.f32 %v209, %v211
    %vm213 = vcmask 7168
    %214 = vst.msk [vmem:[%s9] sm:$0xff] %vm213, %v212
    // Predicated region
    $region58: #{tpu_custom_call.1} parent=1 // pred_check
      _
    $region59: #{tpu_custom_call.1} parent=1 // pred_check_branch
      %216 = sbr.rel (0) target = $region61
    $region60: #{tpu_custom_call.1} parent=1 // pred_region
      _
    $region61: #{tpu_custom_call.1} parent=1 // pred_fallthru
      _
    // Predicated region
    $region62: #{tpu_custom_call.1} parent=1 // pred_check
      _
    $region63: #{tpu_custom_call.1} parent=1 // pred_check_branch
      %218 = sbr.rel (0) target = $region65
    $region64: #{tpu_custom_call.1} parent=1 // pred_region
      _
    $region65: #{tpu_custom_call.1} parent=1 // pred_fallthru
      _
    %219 = vsyncpa [#allocation4], 1
    %220 = vsyncpa [#allocation6], 1
    %221 = vsyncpa [#allocation9], 1

</llo_original>
